<compile_context>
chip_gen: v7x
topology: tpu7x:2x2x1
jax: 0.10.0
libtpu: 0.0.40
codegen_flags: <defaults>
</compile_context>

<pallas_src>
import jax
import jax.numpy as jnp
from jax import lax
from jax.experimental import pallas as pl
from jax.experimental.pallas import tpu as pltpu

LN_EPS = 1e-5        # PyTorch nn.LayerNorm default
TOKEN_CAP = 8192     # target merged tokens per grid step (VMEM may bind first)


def _patch_merging_kernel(x_ref, w_ref, csum_ref, bias_ref, o_ref):
    # x_ref:    (bh, 2, Wh, 2C)  raw dtype; [:,0] = even-h half, [:,1] = odd-h half
    # w_ref:    (2, 2C, C2p)     bf16; gamma + torch.cat channel permutation folded
    # csum_ref: (1, C2p)         f32;  column sums of the gamma-folded (4C, 2C) W
    # bias_ref: (1, C2p)         f32;  beta @ W
    # o_ref:    (bh, Wh, C2p)
    bh, _, wh, c2 = x_ref.shape
    n = bh * wh
    mdt = w_ref.dtype

    xall = x_ref[...]                         # one contiguous block per step
    # NOTE: merging (bh, Wh) into the sublane dim may relayout when Wh is not
    # sublane-aligned; accepted (VMEM-local copy) since rank-3 dot_general is
    # not guaranteed to lower on Mosaic and wrapper-side W padding would add an
    # extra HBM pass over the output.
    xe = xall[:, 0].reshape(n, c2)            # [x0 | x2] channels
    xo = xall[:, 1].reshape(n, c2)            # [x1 | x3] channels

    # Raw-input matmuls on the MXU (LN scaling hoisted past the matmul), f32 acc.
    y = jnp.dot(xe.astype(mdt), w_ref[0], preferred_element_type=jnp.float32)
    y = y + jnp.dot(xo.astype(mdt), w_ref[1], preferred_element_type=jnp.float32)

    # LayerNorm statistics over the virtual 4C axis (f32 sums).
    xe32 = xe.astype(jnp.float32)
    xo32 = xo.astype(jnp.float32)
    inv_c4 = 1.0 / (2 * c2)
    mean = (jnp.sum(xe32, axis=-1, keepdims=True)
            + jnp.sum(xo32, axis=-1, keepdims=True)) * inv_c4
    ex2 = (jnp.sum(xe32 * xe32, axis=-1, keepdims=True)
           + jnp.sum(xo32 * xo32, axis=-1, keepdims=True)) * inv_c4
    var = jnp.maximum(ex2 - mean * mean, 0.0)   # guards masked-tail garbage rows
    inv = lax.rsqrt(var + LN_EPS)

    # ((x - mean)*inv*gamma + beta) @ W  ==  inv*(x@gw - mean*colsum(gw)) + beta@W
    y = inv * (y - mean * csum_ref[...]) + bias_ref[...]
    o_ref[...] = y.reshape(bh, wh, y.shape[-1]).astype(o_ref.dtype)


def _vmem_config():
    """Returns (scoped vmem_limit_bytes, sizing budget bytes, has 2 TensorCores)."""
    kind = ""
    try:
        kind = jax.devices()[0].device_kind.lower()
    except Exception:
        pass
    two_tc = "v7" in kind                        # v7x: 2 TensorCores / chip
    try:
        vmem_phys = int(pltpu.get_tpu_info().vmem_capacity_bytes)
    except Exception:
        vmem_phys = (64 if two_tc else 128) * 1024 * 1024
    if vmem_phys <= 64 * 1024 * 1024:            # v7x-class: stay well under 64 MiB
        vmem_limit = 40 * 1024 * 1024
    else:                                        # v5e / v6e / v4-class: 128 MiB
        vmem_limit = 96 * 1024 * 1024
    budget = (vmem_limit * 3) // 4               # headroom for compiler scratch
    return vmem_limit, budget, two_tc


def patch_merging(x, H, W, w_t, gamma, beta):
    """x: (B, H*W, C); w_t: (4C, 2C) = torch reduction weight transposed;
    gamma/beta: (4C,) LayerNorm affine.  Returns (B, ceil(H/2)*ceil(W/2), 2C).

    Note: MXU operands are quantized to bf16 even for f32 inputs (f32 accumulate).
    """
    B, L, C = x.shape
    assert L == H * W, "input feature has wrong size"
    C2 = 2 * C

    x = x.reshape(B, H, W, C)
    if (H % 2 == 1) or (W % 2 == 1):
        x = jnp.pad(x, ((0, 0), (0, H % 2), (0, W % 2), (0, 0)))
    Hp, Wp = x.shape[1], x.shape[2]
    Hh, Wh = Hp // 2, Wp // 2
    R = B * Hh                        # grid rows; each covers Wh merged tokens

    # Free contiguous reshape: xr[r, dh, wi, dw*C + c] == x[b, 2hi+dh, 2wi+dw, c]
    xr = x.reshape(R, 2, Wh, C2)

    # Fold LN gamma + torch.cat channel ordering into the reduction weight.
    w32 = w_t.astype(jnp.float32)                       # (4C, 2C)
    gw = gamma.astype(jnp.float32)[:, None] * w32       # gamma folded
    w_e = jnp.concatenate([gw[0 * C:1 * C], gw[2 * C:3 * C]], axis=0)  # even-h: [x0|x2]
    w_o = jnp.concatenate([gw[1 * C:2 * C], gw[3 * C:4 * C]], axis=0)  # odd-h:  [x1|x3]
    csum = jnp.sum(gw, axis=0)                          # (2C,)  colsum(gamma*W)
    bias = beta.astype(jnp.float32) @ w32               # (2C,)  beta @ W

    # Lane-pad the output channel dim to 128 when 2C < 128 (dense vst stores).
    C2p = 128 if C2 < 128 else C2
    if C2p != C2:
        pad2 = ((0, 0), (0, C2p - C2))
        w_e, w_o = jnp.pad(w_e, pad2), jnp.pad(w_o, pad2)
        csum = jnp.pad(csum, (0, C2p - C2))
        bias = jnp.pad(bias, (0, C2p - C2))
    w_pk = jnp.stack([w_e, w_o]).astype(jnp.bfloat16)   # (2, 2C, C2p)
    csum = csum.reshape(1, C2p).astype(jnp.float32)
    bias = bias.reshape(1, C2p).astype(jnp.float32)

    # ---- tile sizing (per-chip adaptive VMEM budget) -----------------------
    vmem_limit, budget, two_tc = _vmem_config()
    itm = x.dtype.itemsize
    # Double-buffered pipelined I/O per bh row:
    io_row = 2 * (2 * Wh * C2 * itm) + 2 * (Wh * C2p * itm)
    # In-kernel temporaries per bh row (relayout copies, bf16 operand casts for
    # f32 inputs, f32 stat copies + transient square, f32 accumulator/epilogue):
    tmp_row = Wh * (2 * C2 * itm
                    + (2 * C2 * 2 if itm == 4 else 0)
                    + 2 * C2 * 4 + C2 * 4
                    + 2 * C2p * 4)
    per_row = io_row + tmp_row
    fixed = 2 * (2 * C2 * C2p * 2 + 2 * C2p * 4)   # double-buffered weights + csum/bias
    fixed += 2 * 1024 * 1024                       # misc compiler scratch headroom
    bh = max(1, min((budget - fixed) // per_row, max(1, TOKEN_CAP // Wh)))
    if two_tc and R >= 2:
        bh = min(bh, (R + 1) // 2)    # >=2 grid steps only where there are 2 TCs
    bh = min(bh, R)
    grid = (pl.cdiv(R, bh),)          # partial tail block is masked on store

    out = pl.pallas_call(
        _patch_merging_kernel,
        out_shape=jax.ShapeDtypeStruct((R, Wh, C2p), x.dtype),
        grid_spec=pltpu.PrefetchScalarGridSpec(
            num_scalar_prefetch=0,
            grid=grid,
            in_specs=[
                # one contiguous DMA per step carrying both h-parities
                pl.BlockSpec((bh, 2, Wh, C2), lambda i: (i, 0, 0, 0)),
                pl.BlockSpec((2, C2, C2p), lambda i: (0, 0, 0)),   # constant index
                pl.BlockSpec((1, C2p), lambda i: (0, 0)),          # colsum(gamma*W)
                pl.BlockSpec((1, C2p), lambda i: (0, 0)),          # beta @ W
            ],
            out_specs=pl.BlockSpec((bh, Wh, C2p), lambda i: (i, 0, 0)),
        ),
        compiler_params=pltpu.CompilerParams(
            dimension_semantics=("parallel",),
            vmem_limit_bytes=vmem_limit,
        ),
    )(xr, w_pk, csum, bias)

    if C2p != C2:
        out = out[:, :, :C2]
    return out.reshape(B, Hh * Wh, C2)


def reference_patch_merging(x, H, W, w_t, gamma, beta):
    """Pure-JAX f32 reference mirroring the PyTorch forward (unfused, unpermuted)."""
    B, L, C = x.shape
    x = x.reshape(B, H, W, C)
    if (H % 2 == 1) or (W % 2 == 1):
        x = jnp.pad(x, ((0, 0), (0, H % 2), (0, W % 2), (0, 0)))
    x0 = x[:, 0::2, 0::2, :]
    x1 = x[:, 1::2, 0::2, :]
    x2 = x[:, 0::2, 1::2, :]
    x3 = x[:, 1::2, 1::2, :]
    xc = jnp.concatenate([x0, x1, x2, x3], axis=-1).reshape(B, -1, 4 * C)
    xc = xc.astype(jnp.float32)
    mean = jnp.mean(xc, axis=-1, keepdims=True)
    var = jnp.mean((xc - mean) ** 2, axis=-1, keepdims=True)
    xn = (xc - mean) / jnp.sqrt(var + LN_EPS) * gamma + beta
    return jnp.einsum("blk,kn->bln", xn, w_t)


if __name__ == "__main__":
    key = jax.random.PRNGKey(0)
    k_x, k_w, k_g, k_b = jax.random.split(key, 4)

    B, C, H, W = 2, 4, 16, 16      # dim = 4
    x_f32 = jax.random.normal(k_x, (B, H * W, C), dtype=jnp.float32)

    # torch weight is (2C, 4C); store its transpose so the kernel computes x @ W^T.
    w_torch = jax.random.normal(k_w, (2 * C, 4 * C), dtype=jnp.float32) * 0.1
    w_t = w_torch.T                                      # (4C, 2C)
    gamma = 1.0 + 0.05 * jax.random.normal(k_g, (4 * C,), dtype=jnp.float32)
    beta = 0.05 * jax.random.normal(k_b, (4 * C,), dtype=jnp.float32)

    expected_shape = (B, (H // 2) * (W // 2), 2 * C)

    # bf16 activation path (recommended, mem-bound friendly)
    x_bf16 = x_f32.astype(jnp.bfloat16)
    out_bf16 = jax.block_until_ready(patch_merging(x_bf16, H, W, w_t, gamma, beta))
    ref_bf16 = reference_patch_merging(x_bf16.astype(jnp.float32), H, W, w_t, gamma, beta)
    assert out_bf16.shape == expected_shape, out_bf16.shape
    assert out_bf16.dtype == jnp.bfloat16, out_bf16.dtype
    assert jnp.allclose(out_bf16.astype(jnp.float32), ref_bf16, atol=2e-2, rtol=2e-2)

    # f32 activation path (bf16 MXU operands, f32 accumulation inside the kernel)
    out_f32 = jax.block_until_ready(patch_merging(x_f32, H, W, w_t, gamma, beta))
    ref_f32 = reference_patch_merging(x_f32, H, W, w_t, gamma, beta)
    assert out_f32.shape == expected_shape, out_f32.shape
    assert jnp.allclose(out_f32, ref_f32, atol=2e-2, rtol=2e-2)

    # odd H/W padding path
    Ho = Wo = 7
    x_odd = jax.random.normal(k_x, (1, Ho * Wo, C), dtype=jnp.float32)
    out_odd = jax.block_until_ready(patch_merging(x_odd, Ho, Wo, w_t, gamma, beta))
    ref_odd = reference_patch_merging(x_odd, Ho, Wo, w_t, gamma, beta)
    assert out_odd.shape == (1, 4 * 4, 2 * C), out_odd.shape
    assert jnp.allclose(out_odd, ref_odd, atol=2e-2, rtol=2e-2)

    print("KERNEL_OK")
</pallas_src>

<mosaic_0001>
module attributes {stable_mosaic.version = 11 : i64} {
  func.func @_patch_merging_kernel(%arg0: i32, %arg1: memref<16x2x8x8xbf16, #tpu.memory_space<vmem>>, %arg2: memref<2x8x128xbf16, #tpu.memory_space<vmem>>, %arg3: memref<1x128xf32, #tpu.memory_space<vmem>>, %arg4: memref<1x128xf32, #tpu.memory_space<vmem>>, %arg5: memref<16x8x128xbf16, #tpu.memory_space<vmem>>) attributes {dimension_semantics = [#tpu.dimension_semantics<parallel>], iteration_bounds = array<i64: 1>, scalar_prefetch = 0 : i64, scratch_operands = 0 : i64, tpu.core_type = #tpu.core_type<tc>, window_params = [{transform_indices = @transform_0, window_bounds = array<i64: 16, 2, 8, 8>}, {pipeline_mode = #tpu.pipeline_mode<synchronous>, transform_indices = @transform_1, window_bounds = array<i64: 2, 8, 128>}, {pipeline_mode = #tpu.pipeline_mode<synchronous>, transform_indices = @transform_2, window_bounds = array<i64: 1, 128>}, {pipeline_mode = #tpu.pipeline_mode<synchronous>, transform_indices = @transform_3, window_bounds = array<i64: 1, 128>}, {transform_indices = @transform_4, window_bounds = array<i64: 16, 8, 128>}]} {
    %c0 = arith.constant 0 : index
    %c0_0 = arith.constant 0 : index
    %c0_1 = arith.constant 0 : index
    %c0_2 = arith.constant 0 : index
    %0 = vector.load %arg1[%c0, %c0_0, %c0_1, %c0_2] : memref<16x2x8x8xbf16, #tpu.memory_space<vmem>>, vector<16x2x8x8xbf16>
    %1 = vector.extract_strided_slice %0 {offsets = [0, 0, 0, 0], sizes = [16, 1, 8, 8], strides = [1, 1, 1, 1]} : vector<16x2x8x8xbf16> to vector<16x1x8x8xbf16>
    %2 = vector.shape_cast %1 : vector<16x1x8x8xbf16> to vector<16x8x8xbf16>
    %3 = vector.shape_cast %2 : vector<16x8x8xbf16> to vector<128x8xbf16>
    %4 = vector.extract_strided_slice %0 {offsets = [0, 1, 0, 0], sizes = [16, 1, 8, 8], strides = [1, 1, 1, 1]} : vector<16x2x8x8xbf16> to vector<16x1x8x8xbf16>
    %5 = vector.shape_cast %4 : vector<16x1x8x8xbf16> to vector<16x8x8xbf16>
    %6 = vector.shape_cast %5 : vector<16x8x8xbf16> to vector<128x8xbf16>
    %c0_3 = arith.constant 0 : index
    %c0_4 = arith.constant 0 : index
    %c0_5 = arith.constant 0 : index
    %7 = vector.load %arg2[%c0_3, %c0_4, %c0_5] : memref<2x8x128xbf16, #tpu.memory_space<vmem>>, vector<1x8x128xbf16>
    %8 = vector.shape_cast %7 : vector<1x8x128xbf16> to vector<8x128xbf16>
    %cst = arith.constant dense<0.000000e+00> : vector<128x128xf32>
    %9 = tpu.matmul %3, %8, %cst {dimension_numbers = #tpu.dot_dimension_numbers<[1], [0], [0], [1], [0, 0, 1, 1], [], []>} : vector<128x8xbf16>, vector<8x128xbf16>, vector<128x128xf32> -> vector<128x128xf32>
    %c1 = arith.constant 1 : index
    %c0_6 = arith.constant 0 : index
    %c0_7 = arith.constant 0 : index
    %10 = vector.load %arg2[%c1, %c0_6, %c0_7] : memref<2x8x128xbf16, #tpu.memory_space<vmem>>, vector<1x8x128xbf16>
    %11 = vector.shape_cast %10 : vector<1x8x128xbf16> to vector<8x128xbf16>
    %cst_8 = arith.constant dense<0.000000e+00> : vector<128x128xf32>
    %12 = tpu.matmul %6, %11, %cst_8 {dimension_numbers = #tpu.dot_dimension_numbers<[1], [0], [0], [1], [0, 0, 1, 1], [], []>} : vector<128x8xbf16>, vector<8x128xbf16>, vector<128x128xf32> -> vector<128x128xf32>
    %13 = arith.addf %9, %12 : vector<128x128xf32>
    %14 = arith.extf %3 : vector<128x8xbf16> to vector<128x8xf32>
    %15 = arith.extf %6 : vector<128x8xbf16> to vector<128x8xf32>
    %cst_9 = arith.constant dense<0.000000e+00> : vector<128xf32>
    %16 = vector.multi_reduction <add>, %14, %cst_9 [1] : vector<128x8xf32> to vector<128xf32>
    %17 = vector.shape_cast %16 : vector<128xf32> to vector<128x1xf32>
    %cst_10 = arith.constant dense<0.000000e+00> : vector<128xf32>
    %18 = vector.multi_reduction <add>, %15, %cst_10 [1] : vector<128x8xf32> to vector<128xf32>
    %19 = vector.shape_cast %18 : vector<128xf32> to vector<128x1xf32>
    %20 = arith.addf %17, %19 : vector<128x1xf32>
    %cst_11 = arith.constant 6.250000e-02 : f32
    %21 = vector.broadcast %cst_11 : f32 to vector<128x1xf32>
    %22 = arith.mulf %20, %21 : vector<128x1xf32>
    %23 = arith.mulf %14, %14 : vector<128x8xf32>
    %cst_12 = arith.constant dense<0.000000e+00> : vector<128xf32>
    %24 = vector.multi_reduction <add>, %23, %cst_12 [1] : vector<128x8xf32> to vector<128xf32>
    %25 = vector.shape_cast %24 : vector<128xf32> to vector<128x1xf32>
    %26 = arith.mulf %15, %15 : vector<128x8xf32>
    %cst_13 = arith.constant dense<0.000000e+00> : vector<128xf32>
    %27 = vector.multi_reduction <add>, %26, %cst_13 [1] : vector<128x8xf32> to vector<128xf32>
    %28 = vector.shape_cast %27 : vector<128xf32> to vector<128x1xf32>
    %29 = arith.addf %25, %28 : vector<128x1xf32>
    %cst_14 = arith.constant 6.250000e-02 : f32
    %30 = vector.broadcast %cst_14 : f32 to vector<128x1xf32>
    %31 = arith.mulf %29, %30 : vector<128x1xf32>
    %32 = arith.mulf %22, %22 : vector<128x1xf32>
    %33 = arith.subf %31, %32 : vector<128x1xf32>
    %cst_15 = arith.constant 0.000000e+00 : f32
    %34 = vector.broadcast %cst_15 : f32 to vector<128x1xf32>
    %35 = arith.maximumf %33, %34 : vector<128x1xf32>
    %cst_16 = arith.constant 9.99999974E-6 : f32
    %36 = vector.broadcast %cst_16 : f32 to vector<128x1xf32>
    %37 = arith.addf %35, %36 : vector<128x1xf32>
    %38 = math.rsqrt %37 : vector<128x1xf32>
    %c0_17 = arith.constant 0 : index
    %c0_18 = arith.constant 0 : index
    %39 = vector.load %arg3[%c0_17, %c0_18] : memref<1x128xf32, #tpu.memory_space<vmem>>, vector<1x128xf32>
    %40 = vector.broadcast %22 : vector<128x1xf32> to vector<128x128xf32>
    %41 = vector.broadcast %39 : vector<1x128xf32> to vector<128x128xf32>
    %42 = arith.mulf %40, %41 : vector<128x128xf32>
    %43 = arith.subf %13, %42 : vector<128x128xf32>
    %44 = vector.broadcast %38 : vector<128x1xf32> to vector<128x128xf32>
    %45 = arith.mulf %44, %43 : vector<128x128xf32>
    %c0_19 = arith.constant 0 : index
    %c0_20 = arith.constant 0 : index
    %46 = vector.load %arg4[%c0_19, %c0_20] : memref<1x128xf32, #tpu.memory_space<vmem>>, vector<1x128xf32>
    %47 = vector.broadcast %46 : vector<1x128xf32> to vector<128x128xf32>
    %48 = arith.addf %45, %47 : vector<128x128xf32>
    %49 = vector.shape_cast %48 : vector<128x128xf32> to vector<16x8x128xf32>
    %50 = arith.truncf %49 : vector<16x8x128xf32> to vector<16x8x128xbf16>
    %c0_21 = arith.constant 0 : index
    %c0_22 = arith.constant 0 : index
    %c0_23 = arith.constant 0 : index
    %51 = vector.load %arg5[%c0_21, %c0_22, %c0_23] : memref<16x8x128xbf16, #tpu.memory_space<vmem>>, vector<16x8x128xbf16>
    tpu.vector_store %arg5[%c0_21, %c0_22, %c0_23], %50 {strides = array<i32>} : memref<16x8x128xbf16, #tpu.memory_space<vmem>>, vector<16x8x128xbf16>,
    return
  }
  func.func @transform_0(%arg0: i32) -> (i32, i32, i32, i32) {
    %c0_i32 = arith.constant 0 : i32
    %c0_i32_0 = arith.constant 0 : i32
    %c0_i32_1 = arith.constant 0 : i32
    %c0_i32_2 = arith.constant 0 : i32
    return %arg0, %c0_i32, %c0_i32_0, %c0_i32_1 : i32, i32, i32, i32
  }
  func.func @transform_1(%arg0: i32) -> (i32, i32, i32) {
    %c0_i32 = arith.constant 0 : i32
    %c0_i32_0 = arith.constant 0 : i32
    %c0_i32_1 = arith.constant 0 : i32
    %c0_i32_2 = arith.constant 0 : i32
    return %c0_i32, %c0_i32_0, %c0_i32_1 : i32, i32, i32
  }
  func.func @transform_2(%arg0: i32) -> (i32, i32) {
    %c0_i32 = arith.constant 0 : i32
    %c0_i32_0 = arith.constant 0 : i32
    %c0_i32_1 = arith.constant 0 : i32
    return %c0_i32, %c0_i32_0 : i32, i32
  }
  func.func @transform_3(%arg0: i32) -> (i32, i32) {
    %c0_i32 = arith.constant 0 : i32
    %c0_i32_0 = arith.constant 0 : i32
    %c0_i32_1 = arith.constant 0 : i32
    return %c0_i32, %c0_i32_0 : i32, i32
  }
  func.func @transform_4(%arg0: i32) -> (i32, i32, i32) {
    %c0_i32 = arith.constant 0 : i32
    %c0_i32_0 = arith.constant 0 : i32
    %c0_i32_1 = arith.constant 0 : i32
    return %arg0, %c0_i32, %c0_i32_0 : i32, i32, i32
  }
}

</mosaic_0001>

<llo_original>
// kernel: tpu_custom_call.1
$region0: #{tpu_custom_call.1}
  #allocation0 [shape = 'u32[]', space=smem, size = 0x4, offset = 0x4, fixed_abs, tag = 'smem constant byte address 0x4 - core index']
  #allocation1 [shape = 'u32[144,128]{1,0:T(1,128)}', space=vmem, size = 0x12000, scoped, tag = 'internal scratch']
  %s0 = inlined_call_operand.hbm [shape: bf16[16,2,8,8], index: 0, kind: input, shape index: {}]
  %s1 = inlined_call_operand.hbm [shape: bf16[2,8,128], index: 1, kind: input, shape index: {}]
  %s2 = inlined_call_operand.hbm [shape: f32[1,128], index: 2, kind: input, shape index: {}]
  %s3 = inlined_call_operand.hbm [shape: f32[1,128], index: 3, kind: input, shape index: {}]
  %s4 = inlined_call_operand.hbm [shape: bf16[16,8,128], index: 4, kind: output, shape index: {}]
  %s5 = sld [smem:[#allocation0]]
  $region42: #{tpu_custom_call.1} parent=0
    _
  %s7 = ssub.s32 1, %s5
  %s8 = scalar_select 0, %s7, %s5
  $region1: #{tpu_custom_call.1} parent=0
    #allocation2 [shape = 'u8[65536]{0}', space=vmem, size = 0x10000, scoped, tag = 'input window, operand 0, single buffered']
    #allocation3 [shape = 's32[1]{0}', space=sflag, size = 0x4, scoped, tag = 'scoped memory for tpu_custom_call.1']
    #allocation4 [shape = 's32[1]{0}', space=sflag, size = 0x4, scoped, tag = 'scoped memory for tpu_custom_call.1']
    #allocation5 [shape = 'u8[4096]{0}', space=vmem, size = 0x1000, scoped, tag = 'input window, operand 1, single buffered']
    #allocation6 [shape = 's32[1]{0}', space=sflag, size = 0x4, scoped, tag = 'scoped memory for tpu_custom_call.1']
    #allocation7 [shape = 'u8[512]{0}', space=vmem, size = 0x400, scoped, tag = 'input window, operand 2, single buffered']
    #allocation8 [shape = 'u8[512]{0}', space=vmem, size = 0x400, scoped, tag = 'input window, operand 3, single buffered']
    #allocation9 [shape = 's32[1]{0}', space=sflag, size = 0x4, scoped, tag = 'scoped memory for tpu_custom_call.1']
    #allocation10 [shape = 'u8[32768]{0}', space=vmem, size = 0x8000, scoped, tag = 'output window, operand 0, single buffered']
    %9 = vsyncpa [#allocation3], 0
    %10 = vsyncpa [#allocation6], 0
    %11 = vsyncpa [#allocation9], 0
    %12 = vsyncpa [#allocation4], 0
    // Predicated region
    $region2: #{tpu_custom_call.1} parent=1 // pred_check
      _
    $region3: #{tpu_custom_call.1} parent=1 // pred_check_branch
      %14 = sbr.rel (0) target = $region5
    $region4: #{tpu_custom_call.1} parent=1 // pred_region
      %s16 = ssub.s32 2048, 2048
      %17 = vsyncadd [#allocation3], %s16
      %s18 = sshll.u32 [#allocation2], 4
      %s19 = int_to_ptr.vmem [resolvable:$true] %s18
      %24 = dma.hbm_to_vmem [thread:$0]  %s0, 2048, %s19, [#allocation3], 64, 64, 4
    $region5: #{tpu_custom_call.1} parent=1 // pred_fallthru
      _
    // Predicated region
    $region6: #{tpu_custom_call.1} parent=1 // pred_check
      _
    $region7: #{tpu_custom_call.1} parent=1 // pred_check_branch
      %26 = sbr.rel (0) target = $region9
    $region8: #{tpu_custom_call.1} parent=1 // pred_region
      %s28 = ssub.s32 128, 128
      %29 = vsyncadd [#allocation6], %s28
      %s30 = sshll.u32 [#allocation5], 4
      %s31 = int_to_ptr.vmem [resolvable:$true] %s30
      %36 = dma.hbm_to_vmem [thread:$0]  %s1, 128, %s31, [#allocation6], 64, 64, 4
    $region9: #{tpu_custom_call.1} parent=1 // pred_fallthru
      _
    // Predicated region
    $region10: #{tpu_custom_call.1} parent=1 // pred_check
      _
    $region11: #{tpu_custom_call.1} parent=1 // pred_check_branch
      %38 = sbr.rel (0) target = $region13
    $region12: #{tpu_custom_call.1} parent=1 // pred_region
      %s40 = ssub.s32 16, 16
      %41 = vsyncadd [#allocation6], %s40
      %s43 = sshll.u32 [#allocation7], 4
      %s44 = int_to_ptr.vmem [resolvable:$true] %s43
      %46 = dma.hbm_to_vmem [thread:$0]  %s2, 16, %s44, [#allocation6]
    $region13: #{tpu_custom_call.1} parent=1 // pred_fallthru
      _
    // Predicated region
    $region14: #{tpu_custom_call.1} parent=1 // pred_check
      _
    $region15: #{tpu_custom_call.1} parent=1 // pred_check_branch
      %48 = sbr.rel (0) target = $region17
    $region16: #{tpu_custom_call.1} parent=1 // pred_region
      %s50 = ssub.s32 16, 16
      %51 = vsyncadd [#allocation9], %s50
      %s53 = sshll.u32 [#allocation8], 4
      %s54 = int_to_ptr.vmem [resolvable:$true] %s53
      %56 = dma.hbm_to_vmem [thread:$0]  %s3, 16, %s54, [#allocation9]
    $region17: #{tpu_custom_call.1} parent=1 // pred_fallthru
      _
    // Predicated region
    $region18: #{tpu_custom_call.1} parent=1 // pred_check
      _
    $region19: #{tpu_custom_call.1} parent=1 // pred_check_branch
      %58 = sbr.rel (0) target = $region21
    $region20: #{tpu_custom_call.1} parent=1 // pred_region
      %59 = dma.done [#allocation3], 2048
    $region21: #{tpu_custom_call.1} parent=1 // pred_fallthru
      _
    // Predicated region
    $region22: #{tpu_custom_call.1} parent=1 // pred_check
      _
    $region23: #{tpu_custom_call.1} parent=1 // pred_check_branch
      %61 = sbr.rel (0) target = $region25
    $region24: #{tpu_custom_call.1} parent=1 // pred_region
      %62 = dma.done [#allocation6], 128
    $region25: #{tpu_custom_call.1} parent=1 // pred_fallthru
      _
    // Predicated region
    $region26: #{tpu_custom_call.1} parent=1 // pred_check
      _
    $region27: #{tpu_custom_call.1} parent=1 // pred_check_branch
      %64 = sbr.rel (0) target = $region29
    $region28: #{tpu_custom_call.1} parent=1 // pred_region
      %65 = dma.done [#allocation6], 16
    $region29: #{tpu_custom_call.1} parent=1 // pred_fallthru
      _
    // Predicated region
    $region30: #{tpu_custom_call.1} parent=1 // pred_check
      _
    $region31: #{tpu_custom_call.1} parent=1 // pred_check_branch
      %67 = sbr.rel (0) target = $region33
    $region32: #{tpu_custom_call.1} parent=1 // pred_region
      %68 = dma.done [#allocation9], 16
    $region33: #{tpu_custom_call.1} parent=1 // pred_fallthru
      _
    %v70 = vld [vmem:[#allocation2] sm:$0xf]
    %v71 = vld [vmem:[#allocation2 + $0x4] sm:$0xf]
    %v72 = vld [vmem:[#allocation2 + $0x8] sm:$0xf]
    %v73 = vld [vmem:[#allocation2 + $0xc] sm:$0xf]
    %v74 = vld [vmem:[#allocation2 + $0x10] sm:$0xf]
    %v75 = vld [vmem:[#allocation2 + $0x14] sm:$0xf]
    %v76 = vld [vmem:[#allocation2 + $0x18] sm:$0xf]
    %v77 = vld [vmem:[#allocation2 + $0x1c] sm:$0xf]
    %v78 = vld [vmem:[#allocation2 + $0x20] sm:$0xf]
    %v79 = vld [vmem:[#allocation2 + $0x24] sm:$0xf]
    %v80 = vld [vmem:[#allocation2 + $0x28] sm:$0xf]
    %v81 = vld [vmem:[#allocation2 + $0x2c] sm:$0xf]
    %v82 = vld [vmem:[#allocation2 + $0x30] sm:$0xf]
    %v83 = vld [vmem:[#allocation2 + $0x34] sm:$0xf]
    %v84 = vld [vmem:[#allocation2 + $0x38] sm:$0xf]
    %v85 = vld [vmem:[#allocation2 + $0x3c] sm:$0xf]
    %v86 = vld [vmem:[#allocation2 + $0x40] sm:$0xf]
    %v87 = vld [vmem:[#allocation2 + $0x44] sm:$0xf]
    %v88 = vld [vmem:[#allocation2 + $0x48] sm:$0xf]
    %v89 = vld [vmem:[#allocation2 + $0x4c] sm:$0xf]
    %v90 = vld [vmem:[#allocation2 + $0x50] sm:$0xf]
    %v91 = vld [vmem:[#allocation2 + $0x54] sm:$0xf]
    %v92 = vld [vmem:[#allocation2 + $0x58] sm:$0xf]
    %v93 = vld [vmem:[#allocation2 + $0x5c] sm:$0xf]
    %v94 = vld [vmem:[#allocation2 + $0x60] sm:$0xf]
    %v95 = vld [vmem:[#allocation2 + $0x64] sm:$0xf]
    %v96 = vld [vmem:[#allocation2 + $0x68] sm:$0xf]
    %v97 = vld [vmem:[#allocation2 + $0x6c] sm:$0xf]
    %v98 = vld [vmem:[#allocation2 + $0x70] sm:$0xf]
    %v99 = vld [vmem:[#allocation2 + $0x74] sm:$0xf]
    %v100 = vld [vmem:[#allocation2 + $0x78] sm:$0xf]
    %v101 = vld [vmem:[#allocation2 + $0x7c] sm:$0xf]
    %v102 = vld [vmem:[#allocation5] sm:$0xf]
    %s103 = scalar_lea.vmem [#allocation5], 4
    %v104 = vld [vmem:[%s103] sm:$0xf]
    %v121 = vunpack.c.l.b16 %v71
    %v122 = vunpack.c.l.b16 %v73
    %v123 = vunpack.c.l.b16 %v75
    %v124 = vunpack.c.l.b16 %v77
    %v125 = vunpack.c.l.b16 %v79
    %v126 = vunpack.c.l.b16 %v81
    %v127 = vunpack.c.l.b16 %v83
    %v128 = vunpack.c.l.b16 %v85
    %v129 = vunpack.c.l.b16 %v87
    %v130 = vunpack.c.l.b16 %v89
    %v131 = vunpack.c.l.b16 %v91
    %v132 = vunpack.c.l.b16 %v93
    %v133 = vunpack.c.l.b16 %v95
    %v134 = vunpack.c.l.b16 %v97
    %v135 = vunpack.c.l.b16 %v99
    %v136 = vunpack.c.l.b16 %v101
    %v137 = vpack.c.b16 %v122, %v121
    %v138 = vpack.c.b16 %v124, %v123
    %v139 = vpack.c.b16 %v126, %v125
    %v140 = vpack.c.b16 %v128, %v127
    %v141 = vpack.c.b16 %v130, %v129
    %v142 = vpack.c.b16 %v132, %v131
    %v143 = vpack.c.b16 %v134, %v133
    %v144 = vpack.c.b16 %v136, %v135
    %vm145 = vcmask 64512
    %v147 = vsel %vm145, %v137, 0
    %v150 = vsel %vm145, %v138, 0
    %v153 = vsel %vm145, %v139, 0
    %v156 = vsel %vm145, %v140, 0
    %v159 = vsel %vm145, %v141, 0
    %v162 = vsel %vm145, %v142, 0
    %v165 = vsel %vm145, %v143, 0
    %v168 = vsel %vm145, %v144, 0
    %vm170 = vcmask 1043456
    %v172 = vsel %vm170, %v104, 0
    %174 = vmatprep.subr.bf16.mxu0 0
    %175 = vmatpush1.bf16.msra.mxu0 %v172
    %176 = vmatprep.subr.bf16.mxu0 0
    %177 = vmatpush1.bf16.msra.mxu0 0
    %178 = vmatprep.subr.bf16.mxu0 0
    %179 = vmatpush1.bf16.msra.mxu0 0
    %180 = vmatprep.subr.bf16.mxu0 0
    %181 = vmatpush1.bf16.msra.mxu0 0
    %182 = vmatprep.subr.bf16.mxu0 0
    %183 = vmatpush1.bf16.msra.mxu0 0
    %184 = vmatprep.subr.bf16.mxu0 0
    %185 = vmatpush1.bf16.msra.mxu0 0
    %186 = vmatprep.subr.bf16.mxu0 0
    %187 = vmatpush1.bf16.msra.mxu0 0
    %188 = vmatprep.subr.bf16.mxu0 0
    %189 = vmatpush1.bf16.msra.mxu0 0
    %190 = vmatprep.subr.bf16.mxu0 0
    %191 = vmatpush1.bf16.msra.mxu0 0
    %192 = vmatprep.subr.bf16.mxu0 0
    %193 = vmatpush1.bf16.msra.mxu0 0
    %194 = vmatprep.subr.bf16.mxu0 0
    %195 = vmatpush1.bf16.msra.mxu0 0
    %196 = vmatprep.subr.bf16.mxu0 0
    %197 = vmatpush1.bf16.msra.mxu0 0
    %198 = vmatprep.subr.bf16.mxu0 0
    %199 = vmatpush1.bf16.msra.mxu0 0
    %200 = vmatprep.subr.bf16.mxu0 0
    %201 = vmatpush1.bf16.msra.mxu0 0
    %202 = vmatprep.subr.bf16.mxu0 0
    %203 = vmatpush1.bf16.msra.mxu0 0
    %204 = vmatprep.subr.bf16.mxu0 0
    %205 = vmatpush1.bf16.msra.mxu0 0
    %206 = vmatprep.mubr.bf16.mxu0 0
    %207 = vmatmul.mubr.bf16.gmra.mrb[0].mxu0 %v147
    %v208 = vpop.f32.mrb[0].mxu0
    %v209 = vadd.f32 0.0, %v208
    %v210 = vpop.f32.mrb[0].mxu0
    %v211 = vpop.f32.mrb[0].mxu0
    %v212 = vadd.f32 0.0, %v211
    %v213 = vpop.f32.mrb[0].mxu0
    %214 = vmatprep.mubr.bf16.mxu0 0
    %215 = vmatmul.mubr.bf16.gmra.mrb[0].mxu0 %v150
    %v216 = vpop.f32.mrb[0].mxu0
    %v217 = vadd.f32 0.0, %v216
    %v218 = vpop.f32.mrb[0].mxu0
    %v219 = vpop.f32.mrb[0].mxu0
    %v220 = vadd.f32 0.0, %v219
    %v221 = vpop.f32.mrb[0].mxu0
    %222 = vmatprep.mubr.bf16.mxu0 0
    %223 = vmatmul.mubr.bf16.gmra.mrb[0].mxu0 %v153
    %v224 = vpop.f32.mrb[0].mxu0
    %v225 = vadd.f32 0.0, %v224
    %v226 = vpop.f32.mrb[0].mxu0
    %v227 = vpop.f32.mrb[0].mxu0
    %v228 = vadd.f32 0.0, %v227
    %v229 = vpop.f32.mrb[0].mxu0
    %230 = vmatprep.mubr.bf16.mxu0 0
    %231 = vmatmul.mubr.bf16.gmra.mrb[0].mxu0 %v156
    %v232 = vpop.f32.mrb[0].mxu0
    %v233 = vadd.f32 0.0, %v232
    %v234 = vpop.f32.mrb[0].mxu0
    %v235 = vpop.f32.mrb[0].mxu0
    %v236 = vadd.f32 0.0, %v235
    %v237 = vpop.f32.mrb[0].mxu0
    %238 = vmatprep.mubr.bf16.mxu0 0
    %239 = vmatmul.mubr.bf16.gmra.mrb[0].mxu0 %v159
    %v240 = vpop.f32.mrb[0].mxu0
    %v241 = vadd.f32 0.0, %v240
    %v242 = vpop.f32.mrb[0].mxu0
    %v243 = vpop.f32.mrb[0].mxu0
    %v244 = vadd.f32 0.0, %v243
    %v245 = vpop.f32.mrb[0].mxu0
    %246 = vmatprep.mubr.bf16.mxu0 0
    %247 = vmatmul.mubr.bf16.gmra.mrb[0].mxu0 %v162
    %v248 = vpop.f32.mrb[0].mxu0
    %v249 = vadd.f32 0.0, %v248
    %v250 = vpop.f32.mrb[0].mxu0
    %v251 = vpop.f32.mrb[0].mxu0
    %v252 = vadd.f32 0.0, %v251
    %v253 = vpop.f32.mrb[0].mxu0
    %254 = vmatprep.mubr.bf16.mxu0 0
    %255 = vmatmul.mubr.bf16.gmra.mrb[0].mxu0 %v165
    %v256 = vpop.f32.mrb[0].mxu0
    %v257 = vadd.f32 0.0, %v256
    %v258 = vpop.f32.mrb[0].mxu0
    %v259 = vpop.f32.mrb[0].mxu0
    %v260 = vadd.f32 0.0, %v259
    %v261 = vpop.f32.mrb[0].mxu0
    %262 = vmatprep.mubr.bf16.mxu0 0
    %263 = vmatmul.mubr.bf16.gmra.mrb[0].mxu0 %v168
    %v264 = vpop.f32.mrb[0].mxu0
    %v265 = vadd.f32 0.0, %v264
    %v266 = vpop.f32.mrb[0].mxu0
    %v267 = vpop.f32.mrb[0].mxu0
    %v268 = vadd.f32 0.0, %v267
    %v269 = vpop.f32.mrb[0].mxu0
    %270 = vdwg.mxu0
    %v287 = vunpack.c.l.b16 %v70
    %v288 = vunpack.c.l.b16 %v72
    %v289 = vunpack.c.l.b16 %v74
    %v290 = vunpack.c.l.b16 %v76
    %v291 = vunpack.c.l.b16 %v78
    %v292 = vunpack.c.l.b16 %v80
    %v293 = vunpack.c.l.b16 %v82
    %v294 = vunpack.c.l.b16 %v84
    %v295 = vunpack.c.l.b16 %v86
    %v296 = vunpack.c.l.b16 %v88
    %v297 = vunpack.c.l.b16 %v90
    %v298 = vunpack.c.l.b16 %v92
    %v299 = vunpack.c.l.b16 %v94
    %v300 = vunpack.c.l.b16 %v96
    %v301 = vunpack.c.l.b16 %v98
    %v302 = vunpack.c.l.b16 %v100
    %v303 = vpack.c.b16 %v288, %v287
    %v304 = vpack.c.b16 %v290, %v289
    %v305 = vpack.c.b16 %v292, %v291
    %v306 = vpack.c.b16 %v294, %v293
    %v307 = vpack.c.b16 %v296, %v295
    %v308 = vpack.c.b16 %v298, %v297
    %v309 = vpack.c.b16 %v300, %v299
    %v310 = vpack.c.b16 %v302, %v301
    %v312 = vsel %vm145, %v303, 0
    %v315 = vsel %vm145, %v304, 0
    %v318 = vsel %vm145, %v305, 0
    %v321 = vsel %vm145, %v306, 0
    %v324 = vsel %vm145, %v307, 0
    %v327 = vsel %vm145, %v308, 0
    %v330 = vsel %vm145, %v309, 0
    %v333 = vsel %vm145, %v310, 0
    %v336 = vsel %vm170, %v102, 0
    %338 = vmatprep.subr.bf16.mxu0 0
    %339 = vmatpush1.bf16.msra.mxu0 %v336
    %340 = vmatprep.subr.bf16.mxu0 0
    %341 = vmatpush1.bf16.msra.mxu0 0
    %342 = vmatprep.subr.bf16.mxu0 0
    %343 = vmatpush1.bf16.msra.mxu0 0
    %344 = vmatprep.subr.bf16.mxu0 0
    %345 = vmatpush1.bf16.msra.mxu0 0
    %346 = vmatprep.subr.bf16.mxu0 0
    %347 = vmatpush1.bf16.msra.mxu0 0
    %348 = vmatprep.subr.bf16.mxu0 0
    %349 = vmatpush1.bf16.msra.mxu0 0
    %350 = vmatprep.subr.bf16.mxu0 0
    %351 = vmatpush1.bf16.msra.mxu0 0
    %352 = vmatprep.subr.bf16.mxu0 0
    %353 = vmatpush1.bf16.msra.mxu0 0
    %354 = vmatprep.subr.bf16.mxu0 0
    %355 = vmatpush1.bf16.msra.mxu0 0
    %356 = vmatprep.subr.bf16.mxu0 0
    %357 = vmatpush1.bf16.msra.mxu0 0
    %358 = vmatprep.subr.bf16.mxu0 0
    %359 = vmatpush1.bf16.msra.mxu0 0
    %360 = vmatprep.subr.bf16.mxu0 0
    %361 = vmatpush1.bf16.msra.mxu0 0
    %362 = vmatprep.subr.bf16.mxu0 0
    %363 = vmatpush1.bf16.msra.mxu0 0
    %364 = vmatprep.subr.bf16.mxu0 0
    %365 = vmatpush1.bf16.msra.mxu0 0
    %366 = vmatprep.subr.bf16.mxu0 0
    %367 = vmatpush1.bf16.msra.mxu0 0
    %368 = vmatprep.subr.bf16.mxu0 0
    %369 = vmatpush1.bf16.msra.mxu0 0
    %370 = vmatprep.mubr.bf16.mxu0 0
    %371 = vmatmul.mubr.bf16.gmra.mrb[0].mxu0 %v312
    %v372 = vpop.f32.mrb[0].mxu0
    %v373 = vadd.f32 %v209, %v372
    %v374 = vpop.f32.mrb[0].mxu0
    %v375 = vpop.f32.mrb[0].mxu0
    %v376 = vadd.f32 %v212, %v375
    %v377 = vpop.f32.mrb[0].mxu0
    %378 = vmatprep.mubr.bf16.mxu0 0
    %379 = vmatmul.mubr.bf16.gmra.mrb[0].mxu0 %v315
    %v380 = vpop.f32.mrb[0].mxu0
    %v381 = vadd.f32 %v217, %v380
    %v382 = vpop.f32.mrb[0].mxu0
    %v383 = vpop.f32.mrb[0].mxu0
    %v384 = vadd.f32 %v220, %v383
    %v385 = vpop.f32.mrb[0].mxu0
    %386 = vmatprep.mubr.bf16.mxu0 0
    %387 = vmatmul.mubr.bf16.gmra.mrb[0].mxu0 %v318
    %v388 = vpop.f32.mrb[0].mxu0
    %v389 = vadd.f32 %v225, %v388
    %v390 = vpop.f32.mrb[0].mxu0
    %v391 = vpop.f32.mrb[0].mxu0
    %v392 = vadd.f32 %v228, %v391
    %v393 = vpop.f32.mrb[0].mxu0
    %394 = vmatprep.mubr.bf16.mxu0 0
    %395 = vmatmul.mubr.bf16.gmra.mrb[0].mxu0 %v321
    %v396 = vpop.f32.mrb[0].mxu0
    %v397 = vadd.f32 %v233, %v396
    %v398 = vpop.f32.mrb[0].mxu0
    %v399 = vpop.f32.mrb[0].mxu0
    %v400 = vadd.f32 %v236, %v399
    %v401 = vpop.f32.mrb[0].mxu0
    %402 = vmatprep.mubr.bf16.mxu0 0
    %403 = vmatmul.mubr.bf16.gmra.mrb[0].mxu0 %v324
    %v404 = vpop.f32.mrb[0].mxu0
    %v405 = vadd.f32 %v241, %v404
    %v406 = vpop.f32.mrb[0].mxu0
    %v407 = vpop.f32.mrb[0].mxu0
    %v408 = vadd.f32 %v244, %v407
    %v409 = vpop.f32.mrb[0].mxu0
    %410 = vmatprep.mubr.bf16.mxu0 0
    %411 = vmatmul.mubr.bf16.gmra.mrb[0].mxu0 %v327
    %v412 = vpop.f32.mrb[0].mxu0
    %v413 = vadd.f32 %v249, %v412
    %v414 = vpop.f32.mrb[0].mxu0
    %v415 = vpop.f32.mrb[0].mxu0
    %v416 = vadd.f32 %v252, %v415
    %v417 = vpop.f32.mrb[0].mxu0
    %418 = vmatprep.mubr.bf16.mxu0 0
    %419 = vmatmul.mubr.bf16.gmra.mrb[0].mxu0 %v330
    %v420 = vpop.f32.mrb[0].mxu0
    %v421 = vadd.f32 %v257, %v420
    %v422 = vpop.f32.mrb[0].mxu0
    %v423 = vpop.f32.mrb[0].mxu0
    %v424 = vadd.f32 %v260, %v423
    %v425 = vpop.f32.mrb[0].mxu0
    %426 = vmatprep.mubr.bf16.mxu0 0
    %427 = vmatmul.mubr.bf16.gmra.mrb[0].mxu0 %v333
    %v428 = vpop.f32.mrb[0].mxu0
    %v429 = vadd.f32 %v265, %v428
    %v430 = vpop.f32.mrb[0].mxu0
    %v431 = vpop.f32.mrb[0].mxu0
    %v432 = vadd.f32 %v268, %v431
    %v433 = vpop.f32.mrb[0].mxu0
    %434 = vdwg.mxu0
    %v435 = vunpack.c.l.bf16 %v70
    %v436 = vunpack.c.l.bf16 %v72
    %v437 = vunpack.c.l.bf16 %v74
    %v438 = vunpack.c.l.bf16 %v76
    %v439 = vunpack.c.l.bf16 %v78
    %v440 = vunpack.c.l.bf16 %v80
    %v441 = vunpack.c.l.bf16 %v82
    %v442 = vunpack.c.l.bf16 %v84
    %v443 = vunpack.c.l.bf16 %v86
    %v444 = vunpack.c.l.bf16 %v88
    %v445 = vunpack.c.l.bf16 %v90
    %v446 = vunpack.c.l.bf16 %v92
    %v447 = vunpack.c.l.bf16 %v94
    %v448 = vunpack.c.l.bf16 %v96
    %v449 = vunpack.c.l.bf16 %v98
    %v450 = vunpack.c.l.bf16 %v100
    %v451 = vunpack.c.l.bf16 %v71
    %v452 = vunpack.c.l.bf16 %v73
    %v453 = vunpack.c.l.bf16 %v75
    %v454 = vunpack.c.l.bf16 %v77
    %v455 = vunpack.c.l.bf16 %v79
    %v456 = vunpack.c.l.bf16 %v81
    %v457 = vunpack.c.l.bf16 %v83
    %v458 = vunpack.c.l.bf16 %v85
    %v459 = vunpack.c.l.bf16 %v87
    %v460 = vunpack.c.l.bf16 %v89
    %v461 = vunpack.c.l.bf16 %v91
    %v462 = vunpack.c.l.bf16 %v93
    %v463 = vunpack.c.l.bf16 %v95
    %v464 = vunpack.c.l.bf16 %v97
    %v465 = vunpack.c.l.bf16 %v99
    %v466 = vunpack.c.l.bf16 %v101
    %v467 = vsel %vm145, %v435, 0.0
    %468 = vadd.xlane.f32.xlu0 %v467
    %v469 = vpop.xlane.xlu0 %468
    %v470 = vsel %vm145, %v436, 0.0
    %471 = vadd.xlane.f32.xlu0 %v470
    %v472 = vpop.xlane.xlu0 %471
    %v473 = vsel %vm145, %v437, 0.0
    %474 = vadd.xlane.f32.xlu0 %v473
    %v475 = vpop.xlane.xlu0 %474
    %v476 = vsel %vm145, %v438, 0.0
    %477 = vadd.xlane.f32.xlu0 %v476
    %v478 = vpop.xlane.xlu0 %477
    %v479 = vsel %vm145, %v439, 0.0
    %480 = vadd.xlane.f32.xlu0 %v479
    %v481 = vpop.xlane.xlu0 %480
    %v482 = vsel %vm145, %v440, 0.0
    %483 = vadd.xlane.f32.xlu0 %v482
    %v484 = vpop.xlane.xlu0 %483
    %v485 = vsel %vm145, %v441, 0.0
    %486 = vadd.xlane.f32.xlu0 %v485
    %v487 = vpop.xlane.xlu0 %486
    %v488 = vsel %vm145, %v442, 0.0
    %489 = vadd.xlane.f32.xlu0 %v488
    %v490 = vpop.xlane.xlu0 %489
    %v491 = vsel %vm145, %v443, 0.0
    %492 = vadd.xlane.f32.xlu0 %v491
    %v493 = vpop.xlane.xlu0 %492
    %v494 = vsel %vm145, %v444, 0.0
    %495 = vadd.xlane.f32.xlu0 %v494
    %v496 = vpop.xlane.xlu0 %495
    %v497 = vsel %vm145, %v445, 0.0
    %498 = vadd.xlane.f32.xlu0 %v497
    %v499 = vpop.xlane.xlu0 %498
    %v500 = vsel %vm145, %v446, 0.0
    %501 = vadd.xlane.f32.xlu0 %v500
    %v502 = vpop.xlane.xlu0 %501
    %v503 = vsel %vm145, %v447, 0.0
    %504 = vadd.xlane.f32.xlu0 %v503
    %v505 = vpop.xlane.xlu0 %504
    %v506 = vsel %vm145, %v448, 0.0
    %507 = vadd.xlane.f32.xlu0 %v506
    %v508 = vpop.xlane.xlu0 %507
    %v509 = vsel %vm145, %v449, 0.0
    %510 = vadd.xlane.f32.xlu0 %v509
    %v511 = vpop.xlane.xlu0 %510
    %v512 = vsel %vm145, %v450, 0.0
    %513 = vadd.xlane.f32.xlu0 %v512
    %v514 = vpop.xlane.xlu0 %513
    %v515 = vsel %vm145, %v451, 0.0
    %516 = vadd.xlane.f32.xlu0 %v515
    %v517 = vpop.xlane.xlu0 %516
    %v518 = vsel %vm145, %v452, 0.0
    %519 = vadd.xlane.f32.xlu0 %v518
    %v520 = vpop.xlane.xlu0 %519
    %v521 = vsel %vm145, %v453, 0.0
    %522 = vadd.xlane.f32.xlu0 %v521
    %v523 = vpop.xlane.xlu0 %522
    %v524 = vsel %vm145, %v454, 0.0
    %525 = vadd.xlane.f32.xlu0 %v524
    %v526 = vpop.xlane.xlu0 %525
    %v527 = vsel %vm145, %v455, 0.0
    %528 = vadd.xlane.f32.xlu0 %v527
    %v529 = vpop.xlane.xlu0 %528
    %v530 = vsel %vm145, %v456, 0.0
    %531 = vadd.xlane.f32.xlu0 %v530
    %v532 = vpop.xlane.xlu0 %531
    %v533 = vsel %vm145, %v457, 0.0
    %534 = vadd.xlane.f32.xlu0 %v533
    %v535 = vpop.xlane.xlu0 %534
    %v536 = vsel %vm145, %v458, 0.0
    %537 = vadd.xlane.f32.xlu0 %v536
    %v538 = vpop.xlane.xlu0 %537
    %v539 = vsel %vm145, %v459, 0.0
    %540 = vadd.xlane.f32.xlu0 %v539
    %v541 = vpop.xlane.xlu0 %540
    %v542 = vsel %vm145, %v460, 0.0
    %543 = vadd.xlane.f32.xlu0 %v542
    %v544 = vpop.xlane.xlu0 %543
    %v545 = vsel %vm145, %v461, 0.0
    %546 = vadd.xlane.f32.xlu0 %v545
    %v547 = vpop.xlane.xlu0 %546
    %v548 = vsel %vm145, %v462, 0.0
    %549 = vadd.xlane.f32.xlu0 %v548
    %v550 = vpop.xlane.xlu0 %549
    %v551 = vsel %vm145, %v463, 0.0
    %552 = vadd.xlane.f32.xlu0 %v551
    %v553 = vpop.xlane.xlu0 %552
    %v554 = vsel %vm145, %v464, 0.0
    %555 = vadd.xlane.f32.xlu0 %v554
    %v556 = vpop.xlane.xlu0 %555
    %v557 = vsel %vm145, %v465, 0.0
    %558 = vadd.xlane.f32.xlu0 %v557
    %v559 = vpop.xlane.xlu0 %558
    %v560 = vsel %vm145, %v466, 0.0
    %561 = vadd.xlane.f32.xlu0 %v560
    %v562 = vpop.xlane.xlu0 %561
    %v563 = vadd.f32 %v469, %v517
    %v564 = vadd.f32 %v472, %v520
    %v565 = vadd.f32 %v475, %v523
    %v566 = vadd.f32 %v478, %v526
    %v567 = vadd.f32 %v481, %v529
    %v568 = vadd.f32 %v484, %v532
    %v569 = vadd.f32 %v487, %v535
    %v570 = vadd.f32 %v490, %v538
    %v571 = vadd.f32 %v493, %v541
    %v572 = vadd.f32 %v496, %v544
    %v573 = vadd.f32 %v499, %v547
    %v574 = vadd.f32 %v502, %v550
    %v575 = vadd.f32 %v505, %v553
    %v576 = vadd.f32 %v508, %v556
    %v577 = vadd.f32 %v511, %v559
    %v578 = vadd.f32 %v514, %v562
    %v579 = vmul.f32 %v563, 0.0625
    %v580 = vmul.f32 %v564, 0.0625
    %v581 = vmul.f32 %v565, 0.0625
    %v582 = vmul.f32 %v566, 0.0625
    %v583 = vmul.f32 %v567, 0.0625
    %v584 = vmul.f32 %v568, 0.0625
    %v585 = vmul.f32 %v569, 0.0625
    %v586 = vmul.f32 %v570, 0.0625
    %v587 = vmul.f32 %v571, 0.0625
    %v588 = vmul.f32 %v572, 0.0625
    %v589 = vmul.f32 %v573, 0.0625
    %v590 = vmul.f32 %v574, 0.0625
    %v591 = vmul.f32 %v575, 0.0625
    %v592 = vmul.f32 %v576, 0.0625
    %v593 = vmul.f32 %v577, 0.0625
    %v594 = vmul.f32 %v578, 0.0625
    %v595 = vmul.f32 %v435, %v435
    %v596 = vmul.f32 %v436, %v436
    %v597 = vmul.f32 %v437, %v437
    %v598 = vmul.f32 %v438, %v438
    %v599 = vmul.f32 %v439, %v439
    %v600 = vmul.f32 %v440, %v440
    %v601 = vmul.f32 %v441, %v441
    %v602 = vmul.f32 %v442, %v442
    %v603 = vmul.f32 %v443, %v443
    %v604 = vmul.f32 %v444, %v444
    %v605 = vmul.f32 %v445, %v445
    %v606 = vmul.f32 %v446, %v446
    %v607 = vmul.f32 %v447, %v447
    %v608 = vmul.f32 %v448, %v448
    %v609 = vmul.f32 %v449, %v449
    %v610 = vmul.f32 %v450, %v450
    %v611 = vsel %vm145, %v595, 0.0
    %612 = vadd.xlane.f32.xlu0 %v611
    %v613 = vpop.xlane.xlu0 %612
    %v614 = vsel %vm145, %v596, 0.0
    %615 = vadd.xlane.f32.xlu0 %v614
    %v616 = vpop.xlane.xlu0 %615
    %v617 = vsel %vm145, %v597, 0.0
    %618 = vadd.xlane.f32.xlu0 %v617
    %v619 = vpop.xlane.xlu0 %618
    %v620 = vsel %vm145, %v598, 0.0
    %621 = vadd.xlane.f32.xlu0 %v620
    %v622 = vpop.xlane.xlu0 %621
    %v623 = vsel %vm145, %v599, 0.0
    %624 = vadd.xlane.f32.xlu0 %v623
    %v625 = vpop.xlane.xlu0 %624
    %v626 = vsel %vm145, %v600, 0.0
    %627 = vadd.xlane.f32.xlu0 %v626
    %v628 = vpop.xlane.xlu0 %627
    %v629 = vsel %vm145, %v601, 0.0
    %630 = vadd.xlane.f32.xlu0 %v629
    %v631 = vpop.xlane.xlu0 %630
    %v632 = vsel %vm145, %v602, 0.0
    %633 = vadd.xlane.f32.xlu0 %v632
    %v634 = vpop.xlane.xlu0 %633
    %v635 = vsel %vm145, %v603, 0.0
    %636 = vadd.xlane.f32.xlu0 %v635
    %v637 = vpop.xlane.xlu0 %636
    %v638 = vsel %vm145, %v604, 0.0
    %639 = vadd.xlane.f32.xlu0 %v638
    %v640 = vpop.xlane.xlu0 %639
    %v641 = vsel %vm145, %v605, 0.0
    %642 = vadd.xlane.f32.xlu0 %v641
    %v643 = vpop.xlane.xlu0 %642
    %v644 = vsel %vm145, %v606, 0.0
    %645 = vadd.xlane.f32.xlu0 %v644
    %v646 = vpop.xlane.xlu0 %645
    %v647 = vsel %vm145, %v607, 0.0
    %648 = vadd.xlane.f32.xlu0 %v647
    %v649 = vpop.xlane.xlu0 %648
    %v650 = vsel %vm145, %v608, 0.0
    %651 = vadd.xlane.f32.xlu0 %v650
    %v652 = vpop.xlane.xlu0 %651
    %v653 = vsel %vm145, %v609, 0.0
    %654 = vadd.xlane.f32.xlu0 %v653
    %v655 = vpop.xlane.xlu0 %654
    %v656 = vsel %vm145, %v610, 0.0
    %657 = vadd.xlane.f32.xlu0 %v656
    %v658 = vpop.xlane.xlu0 %657
    %v659 = vmul.f32 %v451, %v451
    %v660 = vmul.f32 %v452, %v452
    %v661 = vmul.f32 %v453, %v453
    %v662 = vmul.f32 %v454, %v454
    %v663 = vmul.f32 %v455, %v455
    %v664 = vmul.f32 %v456, %v456
    %v665 = vmul.f32 %v457, %v457
    %v666 = vmul.f32 %v458, %v458
    %v667 = vmul.f32 %v459, %v459
    %v668 = vmul.f32 %v460, %v460
    %v669 = vmul.f32 %v461, %v461
    %v670 = vmul.f32 %v462, %v462
    %v671 = vmul.f32 %v463, %v463
    %v672 = vmul.f32 %v464, %v464
    %v673 = vmul.f32 %v465, %v465
    %v674 = vmul.f32 %v466, %v466
    %v675 = vsel %vm145, %v659, 0.0
    %676 = vadd.xlane.f32.xlu0 %v675
    %v677 = vpop.xlane.xlu0 %676
    %v678 = vsel %vm145, %v660, 0.0
    %679 = vadd.xlane.f32.xlu0 %v678
    %v680 = vpop.xlane.xlu0 %679
    %v681 = vsel %vm145, %v661, 0.0
    %682 = vadd.xlane.f32.xlu0 %v681
    %v683 = vpop.xlane.xlu0 %682
    %v684 = vsel %vm145, %v662, 0.0
    %685 = vadd.xlane.f32.xlu0 %v684
    %v686 = vpop.xlane.xlu0 %685
    %v687 = vsel %vm145, %v663, 0.0
    %688 = vadd.xlane.f32.xlu0 %v687
    %v689 = vpop.xlane.xlu0 %688
    %v690 = vsel %vm145, %v664, 0.0
    %691 = vadd.xlane.f32.xlu0 %v690
    %v692 = vpop.xlane.xlu0 %691
    %v693 = vsel %vm145, %v665, 0.0
    %694 = vadd.xlane.f32.xlu0 %v693
    %v695 = vpop.xlane.xlu0 %694
    %v696 = vsel %vm145, %v666, 0.0
    %697 = vadd.xlane.f32.xlu0 %v696
    %v698 = vpop.xlane.xlu0 %697
    %v699 = vsel %vm145, %v667, 0.0
    %700 = vadd.xlane.f32.xlu0 %v699
    %v701 = vpop.xlane.xlu0 %700
    %v702 = vsel %vm145, %v668, 0.0
    %703 = vadd.xlane.f32.xlu0 %v702
    %v704 = vpop.xlane.xlu0 %703
    %v705 = vsel %vm145, %v669, 0.0
    %706 = vadd.xlane.f32.xlu0 %v705
    %v707 = vpop.xlane.xlu0 %706
    %v708 = vsel %vm145, %v670, 0.0
    %709 = vadd.xlane.f32.xlu0 %v708
    %v710 = vpop.xlane.xlu0 %709
    %v711 = vsel %vm145, %v671, 0.0
    %712 = vadd.xlane.f32.xlu0 %v711
    %v713 = vpop.xlane.xlu0 %712
    %v714 = vsel %vm145, %v672, 0.0
    %715 = vadd.xlane.f32.xlu0 %v714
    %v716 = vpop.xlane.xlu0 %715
    %v717 = vsel %vm145, %v673, 0.0
    %718 = vadd.xlane.f32.xlu0 %v717
    %v719 = vpop.xlane.xlu0 %718
    %v720 = vsel %vm145, %v674, 0.0
    %721 = vadd.xlane.f32.xlu0 %v720
    %v722 = vpop.xlane.xlu0 %721
    %v723 = vadd.f32 %v613, %v677
    %v724 = vadd.f32 %v616, %v680
    %v725 = vadd.f32 %v619, %v683
    %v726 = vadd.f32 %v622, %v686
    %v727 = vadd.f32 %v625, %v689
    %v728 = vadd.f32 %v628, %v692
    %v729 = vadd.f32 %v631, %v695
    %v730 = vadd.f32 %v634, %v698
    %v731 = vadd.f32 %v637, %v701
    %v732 = vadd.f32 %v640, %v704
    %v733 = vadd.f32 %v643, %v707
    %v734 = vadd.f32 %v646, %v710
    %v735 = vadd.f32 %v649, %v713
    %v736 = vadd.f32 %v652, %v716
    %v737 = vadd.f32 %v655, %v719
    %v738 = vadd.f32 %v658, %v722
    %v739 = vmul.f32 %v723, 0.0625
    %v740 = vmul.f32 %v724, 0.0625
    %v741 = vmul.f32 %v725, 0.0625
    %v742 = vmul.f32 %v726, 0.0625
    %v743 = vmul.f32 %v727, 0.0625
    %v744 = vmul.f32 %v728, 0.0625
    %v745 = vmul.f32 %v729, 0.0625
    %v746 = vmul.f32 %v730, 0.0625
    %v747 = vmul.f32 %v731, 0.0625
    %v748 = vmul.f32 %v732, 0.0625
    %v749 = vmul.f32 %v733, 0.0625
    %v750 = vmul.f32 %v734, 0.0625
    %v751 = vmul.f32 %v735, 0.0625
    %v752 = vmul.f32 %v736, 0.0625
    %v753 = vmul.f32 %v737, 0.0625
    %v754 = vmul.f32 %v738, 0.0625
    %v755 = vmul.f32 %v579, %v579
    %v756 = vmul.f32 %v580, %v580
    %v757 = vmul.f32 %v581, %v581
    %v758 = vmul.f32 %v582, %v582
    %v759 = vmul.f32 %v583, %v583
    %v760 = vmul.f32 %v584, %v584
    %v761 = vmul.f32 %v585, %v585
    %v762 = vmul.f32 %v586, %v586
    %v763 = vmul.f32 %v587, %v587
    %v764 = vmul.f32 %v588, %v588
    %v765 = vmul.f32 %v589, %v589
    %v766 = vmul.f32 %v590, %v590
    %v767 = vmul.f32 %v591, %v591
    %v768 = vmul.f32 %v592, %v592
    %v769 = vmul.f32 %v593, %v593
    %v770 = vmul.f32 %v594, %v594
    %v771 = vsub.f32 %v739, %v755
    %v772 = vsub.f32 %v740, %v756
    %v773 = vsub.f32 %v741, %v757
    %v774 = vsub.f32 %v742, %v758
    %v775 = vsub.f32 %v743, %v759
    %v776 = vsub.f32 %v744, %v760
    %v777 = vsub.f32 %v745, %v761
    %v778 = vsub.f32 %v746, %v762
    %v779 = vsub.f32 %v747, %v763
    %v780 = vsub.f32 %v748, %v764
    %v781 = vsub.f32 %v749, %v765
    %v782 = vsub.f32 %v750, %v766
    %v783 = vsub.f32 %v751, %v767
    %v784 = vsub.f32 %v752, %v768
    %v785 = vsub.f32 %v753, %v769
    %v786 = vsub.f32 %v754, %v770
    %v787 = vmax.f32 %v771, 0.0
    %v788 = vmax.f32 %v772, 0.0
    %v789 = vmax.f32 %v773, 0.0
    %v790 = vmax.f32 %v774, 0.0
    %v791 = vmax.f32 %v775, 0.0
    %v792 = vmax.f32 %v776, 0.0
    %v793 = vmax.f32 %v777, 0.0
    %v794 = vmax.f32 %v778, 0.0
    %v795 = vmax.f32 %v779, 0.0
    %v796 = vmax.f32 %v780, 0.0
    %v797 = vmax.f32 %v781, 0.0
    %v798 = vmax.f32 %v782, 0.0
    %v799 = vmax.f32 %v783, 0.0
    %v800 = vmax.f32 %v784, 0.0
    %v801 = vmax.f32 %v785, 0.0
    %v802 = vmax.f32 %v786, 0.0
    %v803 = vadd.f32 %v787, 1e-05
    %v804 = vadd.f32 %v788, 1e-05
    %v805 = vadd.f32 %v789, 1e-05
    %v806 = vadd.f32 %v790, 1e-05
    %v807 = vadd.f32 %v791, 1e-05
    %v808 = vadd.f32 %v792, 1e-05
    %v809 = vadd.f32 %v793, 1e-05
    %v810 = vadd.f32 %v794, 1e-05
    %v811 = vadd.f32 %v795, 1e-05
    %v812 = vadd.f32 %v796, 1e-05
    %v813 = vadd.f32 %v797, 1e-05
    %v814 = vadd.f32 %v798, 1e-05
    %v815 = vadd.f32 %v799, 1e-05
    %v816 = vadd.f32 %v800, 1e-05
    %v817 = vadd.f32 %v801, 1e-05
    %v818 = vadd.f32 %v802, 1e-05
    %v819 = vrsqrt.pop %v803
    %v820 = vrsqrt.pop %v804
    %v821 = vrsqrt.pop %v805
    %v822 = vrsqrt.pop %v806
    %v823 = vrsqrt.pop %v807
    %v824 = vrsqrt.pop %v808
    %v825 = vrsqrt.pop %v809
    %v826 = vrsqrt.pop %v810
    %v827 = vrsqrt.pop %v811
    %v828 = vrsqrt.pop %v812
    %v829 = vrsqrt.pop %v813
    %v830 = vrsqrt.pop %v814
    %v831 = vrsqrt.pop %v815
    %v832 = vrsqrt.pop %v816
    %v833 = vrsqrt.pop %v817
    %v834 = vrsqrt.pop %v818
    %v835 = vld [vmem:[#allocation7] sm:$0x1]
    %v837 = vlaneseq
    %v838 = vshrl.u32 %v837, 7
    %v839 = vsub.s32 0, %v838
    %v840 = vrot.slane %v835, %v839
    %v842 = vmul.f32 %v579, %v840
    %v843 = vmul.f32 %v580, %v840
    %v844 = vmul.f32 %v581, %v840
    %v845 = vmul.f32 %v582, %v840
    %v846 = vmul.f32 %v583, %v840
    %v847 = vmul.f32 %v584, %v840
    %v848 = vmul.f32 %v585, %v840
    %v849 = vmul.f32 %v586, %v840
    %v850 = vmul.f32 %v587, %v840
    %v851 = vmul.f32 %v588, %v840
    %v852 = vmul.f32 %v589, %v840
    %v853 = vmul.f32 %v590, %v840
    %v854 = vmul.f32 %v591, %v840
    %v855 = vmul.f32 %v592, %v840
    %v856 = vmul.f32 %v593, %v840
    %v857 = vmul.f32 %v594, %v840
    %v858 = vsub.f32 %v373, %v842
    %v859 = vsub.f32 %v376, %v843
    %v860 = vsub.f32 %v381, %v844
    %v861 = vsub.f32 %v384, %v845
    %v862 = vsub.f32 %v389, %v846
    %v863 = vsub.f32 %v392, %v847
    %v864 = vsub.f32 %v397, %v848
    %v865 = vsub.f32 %v400, %v849
    %v866 = vsub.f32 %v405, %v850
    %v867 = vsub.f32 %v408, %v851
    %v868 = vsub.f32 %v413, %v852
    %v869 = vsub.f32 %v416, %v853
    %v870 = vsub.f32 %v421, %v854
    %v871 = vsub.f32 %v424, %v855
    %v872 = vsub.f32 %v429, %v856
    %v873 = vsub.f32 %v432, %v857
    %v874 = vmul.f32 %v819, %v858
    %v875 = vmul.f32 %v820, %v859
    %v876 = vmul.f32 %v821, %v860
    %v877 = vmul.f32 %v822, %v861
    %v878 = vmul.f32 %v823, %v862
    %v879 = vmul.f32 %v824, %v863
    %v880 = vmul.f32 %v825, %v864
    %v881 = vmul.f32 %v826, %v865
    %v882 = vmul.f32 %v827, %v866
    %v883 = vmul.f32 %v828, %v867
    %v884 = vmul.f32 %v829, %v868
    %v885 = vmul.f32 %v830, %v869
    %v886 = vmul.f32 %v831, %v870
    %v887 = vmul.f32 %v832, %v871
    %v888 = vmul.f32 %v833, %v872
    %v889 = vmul.f32 %v834, %v873
    %v890 = vld [vmem:[#allocation8] sm:$0x1]
    %v892 = vlaneseq
    %v893 = vshrl.u32 %v892, 7
    %v894 = vsub.s32 0, %v893
    %v895 = vrot.slane %v890, %v894
    %v897 = vadd.f32 %v874, %v895
    %v898 = vadd.f32 %v875, %v895
    %v899 = vadd.f32 %v876, %v895
    %v900 = vadd.f32 %v877, %v895
    %v901 = vadd.f32 %v878, %v895
    %v902 = vadd.f32 %v879, %v895
    %v903 = vadd.f32 %v880, %v895
    %v904 = vadd.f32 %v881, %v895
    %v905 = vadd.f32 %v882, %v895
    %v906 = vadd.f32 %v883, %v895
    %v907 = vadd.f32 %v884, %v895
    %v908 = vadd.f32 %v885, %v895
    %v909 = vadd.f32 %v886, %v895
    %v910 = vadd.f32 %v887, %v895
    %v911 = vadd.f32 %v888, %v895
    %v912 = vadd.f32 %v889, %v895
    %v913 = vpack.c.bf16 %v897, %v897
    %v914 = vpack.c.bf16 %v898, %v898
    %v915 = vpack.c.bf16 %v899, %v899
    %v916 = vpack.c.bf16 %v900, %v900
    %v917 = vpack.c.bf16 %v901, %v901
    %v918 = vpack.c.bf16 %v902, %v902
    %v919 = vpack.c.bf16 %v903, %v903
    %v920 = vpack.c.bf16 %v904, %v904
    %v921 = vpack.c.bf16 %v905, %v905
    %v922 = vpack.c.bf16 %v906, %v906
    %v923 = vpack.c.bf16 %v907, %v907
    %v924 = vpack.c.bf16 %v908, %v908
    %v925 = vpack.c.bf16 %v909, %v909
    %v926 = vpack.c.bf16 %v910, %v910
    %v927 = vpack.c.bf16 %v911, %v911
    %v928 = vpack.c.bf16 %v912, %v912
    %929 = vst [vmem:[#allocation10] sm:$0xf] %v913
    %930 = vst [vmem:[#allocation10 + $0x4] sm:$0xf] %v914
    %931 = vst [vmem:[#allocation10 + $0x8] sm:$0xf] %v915
    %932 = vst [vmem:[#allocation10 + $0xc] sm:$0xf] %v916
    %933 = vst [vmem:[#allocation10 + $0x10] sm:$0xf] %v917
    %934 = vst [vmem:[#allocation10 + $0x14] sm:$0xf] %v918
    %935 = vst [vmem:[#allocation10 + $0x18] sm:$0xf] %v919
    %936 = vst [vmem:[#allocation10 + $0x1c] sm:$0xf] %v920
    %937 = vst [vmem:[#allocation10 + $0x20] sm:$0xf] %v921
    %938 = vst [vmem:[#allocation10 + $0x24] sm:$0xf] %v922
    %939 = vst [vmem:[#allocation10 + $0x28] sm:$0xf] %v923
    %940 = vst [vmem:[#allocation10 + $0x2c] sm:$0xf] %v924
    %941 = vst [vmem:[#allocation10 + $0x30] sm:$0xf] %v925
    %942 = vst [vmem:[#allocation10 + $0x34] sm:$0xf] %v926
    %943 = vst [vmem:[#allocation10 + $0x38] sm:$0xf] %v927
    %944 = vst [vmem:[#allocation10 + $0x3c] sm:$0xf] %v928
    // Predicated region
    $region34: #{tpu_custom_call.1} parent=1 // pred_check
      _
    $region35: #{tpu_custom_call.1} parent=1 // pred_check_branch
      %946 = sbr.rel (0) target = $region37
    $region36: #{tpu_custom_call.1} parent=1 // pred_region
      %s948 = ssub.s32 1024, 1024
      %949 = vsyncadd [#allocation4], %s948
      %s950 = sshll.u32 [#allocation10], 4
      %s951 = int_to_ptr.vmem [resolvable:$true] %s950
      %956 = dma.vmem_to_hbm [thread:$0]  %s951, 1024, %s4, [#allocation4], 64, 64, 4
    $region37: #{tpu_custom_call.1} parent=1 // pred_fallthru
      _
    // Predicated region
    $region38: #{tpu_custom_call.1} parent=1 // pred_check
      _
    $region39: #{tpu_custom_call.1} parent=1 // pred_check_branch
      %958 = sbr.rel (0) target = $region41
    $region40: #{tpu_custom_call.1} parent=1 // pred_region
      %959 = dma.done [#allocation4], 1024
    $region41: #{tpu_custom_call.1} parent=1 // pred_fallthru
      _
    %960 = vsyncpa [#allocation3], 1
    %961 = vsyncpa [#allocation6], 1
    %962 = vsyncpa [#allocation9], 1
    %963 = vsyncpa [#allocation4], 1

</llo_original>
